<compile_context>
chip_gen: v5e
topology: v5e:2x2
jax: 0.10.0
libtpu: 0.0.40
codegen_flags: <defaults>
</compile_context>

<pallas_src>
import functools

import jax
import jax.numpy as jnp
from jax.experimental import pallas as pl
from jax.experimental.pallas import tpu as pltpu


def _round_up(n: int, m: int) -> int:
    return (n + m - 1) // m * m


def _vmem_limit_bytes() -> int:
    # v5e/v6e: 128 MiB physical (scoped default only 16/32 MiB); v7x: 64 MiB/TC.
    # Leave ~1/8 headroom and cap at 100 MiB.
    try:
        cap = pltpu.get_tpu_info().vmem_capacity_bytes
    except Exception:
        cap = 64 << 20
    return int(min(cap - cap // 8, 100 << 20))


def _mlp_kernel(x_ref, w1_ref, b1_ref, w2_ref, b2_ref, o_ref):
    # In-kernel cast of the x tile to the MXU compute dtype (avoids a separate
    # wrapper-side cast pass over x in HBM).
    x = x_ref[...].astype(w1_ref.dtype)
    # linear1: (TM, Fp) @ (Fp, Hp), f32 accumulation on the MXU.
    h = jnp.dot(x, w1_ref[...], preferred_element_type=jnp.float32)
    # bias + ReLU in f32 (VPU), then intentional downcast before the 2nd MXU pass.
    h = jnp.maximum(h + b1_ref[...], 0.0).astype(w2_ref.dtype)
    # linear2: (TM, Hp) @ (Hp, Cp), f32 accumulation.
    logits = jnp.dot(h, w2_ref[...], preferred_element_type=jnp.float32)
    logits = logits + b2_ref[...]
    probs = jax.nn.sigmoid(logits)
    # Store only the real class columns (output array is unpadded along C).
    o_ref[...] = probs[:, : o_ref.shape[-1]].astype(o_ref.dtype)


def prepare_params(w1, b1, w2, b2, *, compute_dtype=jnp.bfloat16, lane=128):
    """Pad + cast weights ONCE (hoisted out of the per-forward-call path).

    w1: (F, H) (stored transposed vs. PyTorch nn.Linear), b1: (H,),
    w2: (H, C), b2: (C,). Zero padding is mathematically inert.
    NOTE: on v6e/v7x the MXU is 2x256x256 -- if the model dims are tunable,
    choosing H/C as multiples of 256 avoids half-filled systolic passes.
    """
    F, H = w1.shape
    C = w2.shape[1]
    Fp, Hp, Cp = (_round_up(d, lane) for d in (F, H, C))
    w1p = jnp.zeros((Fp, Hp), compute_dtype).at[:F, :H].set(w1.astype(compute_dtype))
    b1p = jnp.zeros((1, Hp), jnp.float32).at[0, :H].set(b1.astype(jnp.float32))
    w2p = jnp.zeros((Hp, Cp), compute_dtype).at[:H, :C].set(w2.astype(compute_dtype))
    b2p = jnp.zeros((1, Cp), jnp.float32).at[0, :C].set(b2.astype(jnp.float32))
    return w1p, b1p, w2p, b2p


@functools.partial(
    jax.jit,
    static_argnames=("num_classes", "block_rows", "out_dtype", "single_buffer_weights"),
)
def multilabel_class_nn(x, w1p, b1p, w2p, b2p, *, num_classes, block_rows=512,
                        out_dtype=jnp.float32, single_buffer_weights=True):
    """Forward pass: x (B, F) f32 -> (B, num_classes) probabilities."""
    B, F = x.shape
    Fp, Hp = w1p.shape
    Cp = w2p.shape[1]
    C = int(num_classes)
    assert Cp >= C and b2p.shape[-1] == Cp and b1p.shape[-1] == Hp

    # ---- batch tile ------------------------------------------------------
    # bf16 packs 16 rows per sublane group -> keep TM a multiple of 16.
    sub = 16 if w1p.dtype == jnp.bfloat16 else 8
    TM = min(block_rows, _round_up(B, sub))
    # Guarantee >= 2 grid steps when the batch allows it, so the parallel axis
    # can be sharded across both v7x TensorCores.
    if B >= 2 * sub:
        TM = min(TM, _round_up(-(-B // 2), sub))
    Bp = _round_up(B, TM)

    # ---- x: pad only when actually needed (cast to bf16 happens in-kernel) --
    if (Bp, Fp) != (B, F):
        xp = jnp.zeros((Bp, Fp), x.dtype).at[:B, :F].set(x)
    else:
        xp = x

    grid = (Bp // TM,)

    def const_spec(shape):
        # Constant index_map -> never re-fetched across grid steps; a second
        # pipeline buffer would only burn VMEM, so single-buffer it.
        if single_buffer_weights:
            return pl.BlockSpec(shape, lambda i: (0, 0),
                                pipeline_mode=pl.Buffered(1))
        return pl.BlockSpec(shape, lambda i: (0, 0))

    out = pl.pallas_call(
        _mlp_kernel,
        out_shape=jax.ShapeDtypeStruct((Bp, C), out_dtype),
        grid_spec=pltpu.PrefetchScalarGridSpec(
            num_scalar_prefetch=0,
            grid=grid,
            in_specs=[
                # x tile advances with the batch grid index.
                pl.BlockSpec((TM, Fp), lambda i: (i, 0)),
                const_spec((Fp, Hp)),   # w1 (VMEM-resident)
                const_spec((1, Hp)),    # b1
                const_spec((Hp, Cp)),   # w2
                const_spec((1, Cp)),    # b2
            ],
            # Output keeps the true class dim: no padded writeback for small C.
            out_specs=pl.BlockSpec((TM, C), lambda i: (i, 0)),
        ),
        compiler_params=pltpu.CompilerParams(
            dimension_semantics=("parallel",),
            vmem_limit_bytes=_vmem_limit_bytes(),
        ),
    )(xp, w1p, b1p, w2p, b2p)

    return out if Bp == B else out[:B]


def _forward(x, params, **kw):
    """Run the kernel; gracefully fall back to default (double) buffering of the
    weights if the installed JAX/Mosaic version rejects pl.Buffered(1)."""
    try:
        return multilabel_class_nn(x, *params, **kw)
    except Exception:
        return multilabel_class_nn(x, *params, single_buffer_weights=False, **kw)


def init_params(key, num_features, num_classes, hidden_layers):
    """Deterministic init matching nn.Linear's U(-1/sqrt(fan_in), 1/sqrt(fan_in))."""
    k1, k2, k3, k4 = jax.random.split(key, 4)
    bound1 = 1.0 / jnp.sqrt(num_features)
    bound2 = 1.0 / jnp.sqrt(hidden_layers)
    # stored transposed relative to PyTorch: (in, out)
    w1 = jax.random.uniform(k1, (num_features, hidden_layers), jnp.float32,
                            -bound1, bound1)
    b1 = jax.random.uniform(k2, (hidden_layers,), jnp.float32, -bound1, bound1)
    w2 = jax.random.uniform(k3, (hidden_layers, num_classes), jnp.float32,
                            -bound2, bound2)
    b2 = jax.random.uniform(k4, (num_classes,), jnp.float32, -bound2, bound2)
    return w1, b1, w2, b2


if __name__ == "__main__":
    num_features = 16
    num_classes = 4
    hidden_layers = 32
    batch = 8

    key = jax.random.PRNGKey(0)
    kx, kp = jax.random.split(key)
    x = jax.random.normal(kx, (batch, num_features), dtype=jnp.float32)
    w1, b1, w2, b2 = init_params(kp, num_features, num_classes, hidden_layers)

    # Pure-JAX f32 reference.
    ref = jax.nn.sigmoid(jnp.maximum(x @ w1 + b1, 0.0) @ w2 + b2)

    # bf16 MXU path (f32 accumulation): weights padded/cast once, outside the call.
    params_bf16 = prepare_params(w1, b1, w2, b2, compute_dtype=jnp.bfloat16)
    out = jax.block_until_ready(_forward(x, params_bf16, num_classes=num_classes))
    assert out.shape == (batch, num_classes)
    assert jnp.allclose(out, ref, atol=2e-2, rtol=2e-2), (
        f"max abs err {jnp.max(jnp.abs(out - ref))}")

    # f32 operand path: tight agreement with the reference.
    params_f32 = prepare_params(w1, b1, w2, b2, compute_dtype=jnp.float32)
    out_f32 = jax.block_until_ready(_forward(x, params_f32, num_classes=num_classes))
    assert jnp.allclose(out_f32, ref, atol=1e-5, rtol=1e-5), (
        f"max abs err {jnp.max(jnp.abs(out_f32 - ref))}")

    print("KERNEL_OK")
</pallas_src>

<mosaic_0001>
module attributes {stable_mosaic.version = 11 : i64} {
  func.func @_mlp_kernel(%arg0: i32, %arg1: memref<16x128xf32, #tpu.memory_space<vmem>>, %arg2: memref<128x128xbf16, #tpu.memory_space<vmem>>, %arg3: memref<1x128xf32, #tpu.memory_space<vmem>>, %arg4: memref<128x128xbf16, #tpu.memory_space<vmem>>, %arg5: memref<1x128xf32, #tpu.memory_space<vmem>>, %arg6: memref<16x4xf32, #tpu.memory_space<vmem>>) attributes {dimension_semantics = [#tpu.dimension_semantics<parallel>], iteration_bounds = array<i64: 1>, scalar_prefetch = 0 : i64, scratch_operands = 0 : i64, tpu.core_type = #tpu.core_type<tc>, window_params = [{transform_indices = @transform_0, window_bounds = array<i64: 16, 128>}, {pipeline_mode = #tpu.pipeline_mode<synchronous>, transform_indices = @transform_1, window_bounds = array<i64: 128, 128>}, {pipeline_mode = #tpu.pipeline_mode<synchronous>, transform_indices = @transform_2, window_bounds = array<i64: 1, 128>}, {pipeline_mode = #tpu.pipeline_mode<synchronous>, transform_indices = @transform_3, window_bounds = array<i64: 128, 128>}, {pipeline_mode = #tpu.pipeline_mode<synchronous>, transform_indices = @transform_4, window_bounds = array<i64: 1, 128>}, {transform_indices = @transform_5, window_bounds = array<i64: 16, 4>}]} {
    %c0 = arith.constant 0 : index
    %c0_0 = arith.constant 0 : index
    %0 = vector.load %arg1[%c0, %c0_0] : memref<16x128xf32, #tpu.memory_space<vmem>>, vector<16x128xf32>
    %1 = arith.truncf %0 : vector<16x128xf32> to vector<16x128xbf16>
    %c0_1 = arith.constant 0 : index
    %c0_2 = arith.constant 0 : index
    %2 = vector.load %arg2[%c0_1, %c0_2] : memref<128x128xbf16, #tpu.memory_space<vmem>>, vector<128x128xbf16>
    %cst = arith.constant dense<0.000000e+00> : vector<16x128xf32>
    %3 = tpu.matmul %1, %2, %cst {dimension_numbers = #tpu.dot_dimension_numbers<[1], [0], [0], [1], [0, 0, 1, 1], [], []>} : vector<16x128xbf16>, vector<128x128xbf16>, vector<16x128xf32> -> vector<16x128xf32>
    %c0_3 = arith.constant 0 : index
    %c0_4 = arith.constant 0 : index
    %4 = vector.load %arg3[%c0_3, %c0_4] : memref<1x128xf32, #tpu.memory_space<vmem>>, vector<1x128xf32>
    %5 = vector.broadcast %4 : vector<1x128xf32> to vector<16x128xf32>
    %6 = arith.addf %3, %5 : vector<16x128xf32>
    %cst_5 = arith.constant 0.000000e+00 : f32
    %7 = vector.broadcast %cst_5 : f32 to vector<16x128xf32>
    %8 = arith.maximumf %6, %7 : vector<16x128xf32>
    %9 = arith.truncf %8 : vector<16x128xf32> to vector<16x128xbf16>
    %c0_6 = arith.constant 0 : index
    %c0_7 = arith.constant 0 : index
    %10 = vector.load %arg4[%c0_6, %c0_7] : memref<128x128xbf16, #tpu.memory_space<vmem>>, vector<128x128xbf16>
    %cst_8 = arith.constant dense<0.000000e+00> : vector<16x128xf32>
    %11 = tpu.matmul %9, %10, %cst_8 {dimension_numbers = #tpu.dot_dimension_numbers<[1], [0], [0], [1], [0, 0, 1, 1], [], []>} : vector<16x128xbf16>, vector<128x128xbf16>, vector<16x128xf32> -> vector<16x128xf32>
    %c0_9 = arith.constant 0 : index
    %c0_10 = arith.constant 0 : index
    %12 = vector.load %arg5[%c0_9, %c0_10] : memref<1x128xf32, #tpu.memory_space<vmem>>, vector<1x128xf32>
    %13 = vector.broadcast %12 : vector<1x128xf32> to vector<16x128xf32>
    %14 = arith.addf %11, %13 : vector<16x128xf32>
    %15 = arith.negf %14 : vector<16x128xf32>
    %16 = math.exp %15 : vector<16x128xf32>
    %cst_11 = arith.constant 1.000000e+00 : f32
    %17 = vector.broadcast %cst_11 : f32 to vector<16x128xf32>
    %18 = arith.addf %17, %16 : vector<16x128xf32>
    %19 = arith.divf %17, %18 : vector<16x128xf32>
    %20 = vector.extract_strided_slice %19 {offsets = [0, 0], sizes = [16, 4], strides = [1, 1]} : vector<16x128xf32> to vector<16x4xf32>
    %c0_12 = arith.constant 0 : index
    %c0_13 = arith.constant 0 : index
    %21 = vector.load %arg6[%c0_12, %c0_13] : memref<16x4xf32, #tpu.memory_space<vmem>>, vector<16x4xf32>
    tpu.vector_store %arg6[%c0_12, %c0_13], %20 {strides = array<i32>} : memref<16x4xf32, #tpu.memory_space<vmem>>, vector<16x4xf32>,
    return
  }
  func.func @transform_0(%arg0: i32) -> (i32, i32) {
    %c0_i32 = arith.constant 0 : i32
    %c0_i32_0 = arith.constant 0 : i32
    return %arg0, %c0_i32 : i32, i32
  }
  func.func @transform_1(%arg0: i32) -> (i32, i32) {
    %c0_i32 = arith.constant 0 : i32
    %c0_i32_0 = arith.constant 0 : i32
    %c0_i32_1 = arith.constant 0 : i32
    return %c0_i32, %c0_i32_0 : i32, i32
  }
  func.func @transform_2(%arg0: i32) -> (i32, i32) {
    %c0_i32 = arith.constant 0 : i32
    %c0_i32_0 = arith.constant 0 : i32
    %c0_i32_1 = arith.constant 0 : i32
    return %c0_i32, %c0_i32_0 : i32, i32
  }
  func.func @transform_3(%arg0: i32) -> (i32, i32) {
    %c0_i32 = arith.constant 0 : i32
    %c0_i32_0 = arith.constant 0 : i32
    %c0_i32_1 = arith.constant 0 : i32
    return %c0_i32, %c0_i32_0 : i32, i32
  }
  func.func @transform_4(%arg0: i32) -> (i32, i32) {
    %c0_i32 = arith.constant 0 : i32
    %c0_i32_0 = arith.constant 0 : i32
    %c0_i32_1 = arith.constant 0 : i32
    return %c0_i32, %c0_i32_0 : i32, i32
  }
  func.func @transform_5(%arg0: i32) -> (i32, i32) {
    %c0_i32 = arith.constant 0 : i32
    %c0_i32_0 = arith.constant 0 : i32
    return %arg0, %c0_i32 : i32, i32
  }
}

module attributes {stable_mosaic.version = 11 : i64} {
  func.func @_mlp_kernel(%arg0: i32, %arg1: memref<16x128xf32, #tpu.memory_space<vmem>>, %arg2: memref<128x128xbf16, #tpu.memory_space<vmem>>, %arg3: memref<1x128xf32, #tpu.memory_space<vmem>>, %arg4: memref<128x128xbf16, #tpu.memory_space<vmem>>, %arg5: memref<1x128xf32, #tpu.memory_space<vmem>>, %arg6: memref<16x4xf32, #tpu.memory_space<vmem>>) attributes {dimension_semantics = [#tpu.dimension_semantics<parallel>], iteration_bounds = array<i64: 1>, scalar_prefetch = 0 : i64, scratch_operands = 0 : i64, tpu.core_type = #tpu.core_type<tc>, window_params = [{transform_indices = @transform_0, window_bounds = array<i64: 16, 128>}, {pipeline_mode = #tpu.pipeline_mode<synchronous>, transform_indices = @transform_1, window_bounds = array<i64: 128, 128>}, {pipeline_mode = #tpu.pipeline_mode<synchronous>, transform_indices = @transform_2, window_bounds = array<i64: 1, 128>}, {pipeline_mode = #tpu.pipeline_mode<synchronous>, transform_indices = @transform_3, window_bounds = array<i64: 128, 128>}, {pipeline_mode = #tpu.pipeline_mode<synchronous>, transform_indices = @transform_4, window_bounds = array<i64: 1, 128>}, {transform_indices = @transform_5, window_bounds = array<i64: 16, 4>}]} {
    %c0 = arith.constant 0 : index
    %c0_0 = arith.constant 0 : index
    %0 = vector.load %arg1[%c0, %c0_0] : memref<16x128xf32, #tpu.memory_space<vmem>>, vector<16x128xf32>
    %1 = arith.truncf %0 : vector<16x128xf32> to vector<16x128xbf16>
    %c0_1 = arith.constant 0 : index
    %c0_2 = arith.constant 0 : index
    %2 = vector.load %arg2[%c0_1, %c0_2] : memref<128x128xbf16, #tpu.memory_space<vmem>>, vector<128x128xbf16>
    %cst = arith.constant dense<0.000000e+00> : vector<16x128xf32>
    %3 = tpu.matmul %1, %2, %cst {dimension_numbers = #tpu.dot_dimension_numbers<[1], [0], [0], [1], [0, 0, 1, 1], [], []>} : vector<16x128xbf16>, vector<128x128xbf16>, vector<16x128xf32> -> vector<16x128xf32>
    %c0_3 = arith.constant 0 : index
    %c0_4 = arith.constant 0 : index
    %4 = vector.load %arg3[%c0_3, %c0_4] : memref<1x128xf32, #tpu.memory_space<vmem>>, vector<1x128xf32>
    %5 = vector.broadcast %4 : vector<1x128xf32> to vector<16x128xf32>
    %6 = arith.addf %3, %5 : vector<16x128xf32>
    %cst_5 = arith.constant 0.000000e+00 : f32
    %7 = vector.broadcast %cst_5 : f32 to vector<16x128xf32>
    %8 = arith.maximumf %6, %7 : vector<16x128xf32>
    %9 = arith.truncf %8 : vector<16x128xf32> to vector<16x128xbf16>
    %c0_6 = arith.constant 0 : index
    %c0_7 = arith.constant 0 : index
    %10 = vector.load %arg4[%c0_6, %c0_7] : memref<128x128xbf16, #tpu.memory_space<vmem>>, vector<128x128xbf16>
    %cst_8 = arith.constant dense<0.000000e+00> : vector<16x128xf32>
    %11 = tpu.matmul %9, %10, %cst_8 {dimension_numbers = #tpu.dot_dimension_numbers<[1], [0], [0], [1], [0, 0, 1, 1], [], []>} : vector<16x128xbf16>, vector<128x128xbf16>, vector<16x128xf32> -> vector<16x128xf32>
    %c0_9 = arith.constant 0 : index
    %c0_10 = arith.constant 0 : index
    %12 = vector.load %arg5[%c0_9, %c0_10] : memref<1x128xf32, #tpu.memory_space<vmem>>, vector<1x128xf32>
    %13 = vector.broadcast %12 : vector<1x128xf32> to vector<16x128xf32>
    %14 = arith.addf %11, %13 : vector<16x128xf32>
    %15 = arith.negf %14 : vector<16x128xf32>
    %16 = math.exp %15 : vector<16x128xf32>
    %cst_11 = arith.constant 1.000000e+00 : f32
    %17 = vector.broadcast %cst_11 : f32 to vector<16x128xf32>
    %18 = arith.addf %17, %16 : vector<16x128xf32>
    %19 = arith.divf %17, %18 : vector<16x128xf32>
    %20 = vector.extract_strided_slice %19 {offsets = [0, 0], sizes = [16, 4], strides = [1, 1]} : vector<16x128xf32> to vector<16x4xf32>
    %c0_12 = arith.constant 0 : index
    %c0_13 = arith.constant 0 : index
    %21 = vector.load %arg6[%c0_12, %c0_13] : memref<16x4xf32, #tpu.memory_space<vmem>>, vector<16x4xf32>
    tpu.vector_store %arg6[%c0_12, %c0_13], %20 {strides = array<i32>} : memref<16x4xf32, #tpu.memory_space<vmem>>, vector<16x4xf32>,
    return
  }
  func.func @transform_0(%arg0: i32) -> (i32, i32) {
    %c0_i32 = arith.constant 0 : i32
    %c0_i32_0 = arith.constant 0 : i32
    return %arg0, %c0_i32 : i32, i32
  }
  func.func @transform_1(%arg0: i32) -> (i32, i32) {
    %c0_i32 = arith.constant 0 : i32
    %c0_i32_0 = arith.constant 0 : i32
    %c0_i32_1 = arith.constant 0 : i32
    return %c0_i32, %c0_i32_0 : i32, i32
  }
  func.func @transform_2(%arg0: i32) -> (i32, i32) {
    %c0_i32 = arith.constant 0 : i32
    %c0_i32_0 = arith.constant 0 : i32
    %c0_i32_1 = arith.constant 0 : i32
    return %c0_i32, %c0_i32_0 : i32, i32
  }
  func.func @transform_3(%arg0: i32) -> (i32, i32) {
    %c0_i32 = arith.constant 0 : i32
    %c0_i32_0 = arith.constant 0 : i32
    %c0_i32_1 = arith.constant 0 : i32
    return %c0_i32, %c0_i32_0 : i32, i32
  }
  func.func @transform_4(%arg0: i32) -> (i32, i32) {
    %c0_i32 = arith.constant 0 : i32
    %c0_i32_0 = arith.constant 0 : i32
    %c0_i32_1 = arith.constant 0 : i32
    return %c0_i32, %c0_i32_0 : i32, i32
  }
  func.func @transform_5(%arg0: i32) -> (i32, i32) {
    %c0_i32 = arith.constant 0 : i32
    %c0_i32_0 = arith.constant 0 : i32
    return %arg0, %c0_i32 : i32, i32
  }
}

</mosaic_0001>

<llo_original>
// kernel: multilabel_class_nn.1
$region0: #{multilabel_class_nn.1}
  #allocation0 [shape = 'u32[]', space=smem, size = 0x4, offset = 0x4, fixed_abs, tag = 'smem constant byte address 0x4 - core index']
  #allocation1 [shape = 'u32[72,128]{1,0:T(1,128)}', space=vmem, size = 0x9000, scoped, tag = 'internal scratch']
  %s0 = inlined_call_operand.vmem [shape: f32[16,128], index: 0, kind: input, shape index: {}]
  %s1 = inlined_call_operand.hbm [shape: bf16[128,128], index: 1, kind: input, shape index: {}]
  %s2 = inlined_call_operand.vmem [shape: f32[1,128], index: 2, kind: input, shape index: {}]
  %s3 = inlined_call_operand.hbm [shape: bf16[128,128], index: 3, kind: input, shape index: {}]
  %s4 = inlined_call_operand.vmem [shape: f32[1,128], index: 4, kind: input, shape index: {}]
  %s5 = inlined_call_operand.vmem [shape: f32[16,4], index: 5, kind: output, shape index: {}]
  %s6 = sld [smem:[#allocation0]]
  $region38: #{multilabel_class_nn.1} parent=0
    _
  %s8 = ssub.s32 1, %s6
  %s9 = scalar_select 0, %s8, %s6
  $region1: #{multilabel_class_nn.1} parent=0
    #allocation2 [shape = 'u8[32768]{0}', space=vmem, size = 0x8000, scoped, tag = 'input window, operand 1, single buffered']
    #allocation3 [shape = 's32[1]{0}', space=sflag, size = 0x4, scoped, tag = 'scoped memory for multilabel_class_nn.1']
    #allocation4 [shape = 'u8[32768]{0}', space=vmem, size = 0x8000, scoped, tag = 'input window, operand 3, single buffered']
    #allocation5 [shape = 's32[1]{0}', space=sflag, size = 0x4, scoped, tag = 'scoped memory for multilabel_class_nn.1']
    %10 = vsyncpa [#allocation3], 0
    %11 = vsyncpa [#allocation5], 0
    // Predicated region
    $region2: #{multilabel_class_nn.1} parent=1 // pred_check
      _
    $region3: #{multilabel_class_nn.1} parent=1 // pred_check_branch
      %13 = sbr.rel (0) target = $region5
    $region4: #{multilabel_class_nn.1} parent=1 // pred_region
      _
    $region5: #{multilabel_class_nn.1} parent=1 // pred_fallthru
      _
    // Predicated region
    $region6: #{multilabel_class_nn.1} parent=1 // pred_check
      _
    $region7: #{multilabel_class_nn.1} parent=1 // pred_check_branch
      %15 = sbr.rel (0) target = $region9
    $region8: #{multilabel_class_nn.1} parent=1 // pred_region
      %17 = vsyncadd [#allocation3], 0
      %s18 = sshll.u32 %s1, 4
      %s19 = int_to_ptr.hbm [resolvable:$true] %s18
      %s20 = sshll.u32 [#allocation2], 4
      %s21 = int_to_ptr.vmem [resolvable:$true] %s20
      %26 = dma.hbm_to_vmem [thread:$0]  %s19, 1024, %s21, [#allocation3], 64, 64, 4
    $region9: #{multilabel_class_nn.1} parent=1 // pred_fallthru
      _
    // Predicated region
    $region10: #{multilabel_class_nn.1} parent=1 // pred_check
      _
    $region11: #{multilabel_class_nn.1} parent=1 // pred_check_branch
      %28 = sbr.rel (0) target = $region13
    $region12: #{multilabel_class_nn.1} parent=1 // pred_region
      _
    $region13: #{multilabel_class_nn.1} parent=1 // pred_fallthru
      _
    // Predicated region
    $region14: #{multilabel_class_nn.1} parent=1 // pred_check
      _
    $region15: #{multilabel_class_nn.1} parent=1 // pred_check_branch
      %30 = sbr.rel (0) target = $region17
    $region16: #{multilabel_class_nn.1} parent=1 // pred_region
      %32 = vsyncadd [#allocation5], 0
      %s33 = sshll.u32 %s3, 4
      %s34 = int_to_ptr.hbm [resolvable:$true] %s33
      %s35 = sshll.u32 [#allocation4], 4
      %s36 = int_to_ptr.vmem [resolvable:$true] %s35
      %41 = dma.hbm_to_vmem [thread:$0]  %s34, 1024, %s36, [#allocation5], 64, 64, 4
    $region17: #{multilabel_class_nn.1} parent=1 // pred_fallthru
      _
    // Predicated region
    $region18: #{multilabel_class_nn.1} parent=1 // pred_check
      _
    $region19: #{multilabel_class_nn.1} parent=1 // pred_check_branch
      %43 = sbr.rel (0) target = $region21
    $region20: #{multilabel_class_nn.1} parent=1 // pred_region
      _
    $region21: #{multilabel_class_nn.1} parent=1 // pred_fallthru
      _
    // Predicated region
    $region22: #{multilabel_class_nn.1} parent=1 // pred_check
      _
    $region23: #{multilabel_class_nn.1} parent=1 // pred_check_branch
      %45 = sbr.rel (0) target = $region25
    $region24: #{multilabel_class_nn.1} parent=1 // pred_region
      %47 = dma.done [#allocation3], 1024
    $region25: #{multilabel_class_nn.1} parent=1 // pred_fallthru
      _
    // Predicated region
    $region26: #{multilabel_class_nn.1} parent=1 // pred_check
      _
    $region27: #{multilabel_class_nn.1} parent=1 // pred_check_branch
      %49 = sbr.rel (0) target = $region29
    $region28: #{multilabel_class_nn.1} parent=1 // pred_region
      %51 = dma.done [#allocation5], 1024
    $region29: #{multilabel_class_nn.1} parent=1 // pred_fallthru
      _
    %v52 = vld [vmem:[%s0] sm:$0xff]
    %v53 = vld [vmem:[%s0 + $0x8] sm:$0xff]
    %v54 = vpack.c.bf16 %v53, %v52
    %v55 = vld [vmem:[#allocation2] sm:$0xf]
    %v56 = vld [vmem:[#allocation2 + $0x4] sm:$0xf]
    %v57 = vld [vmem:[#allocation2 + $0x8] sm:$0xf]
    %v58 = vld [vmem:[#allocation2 + $0xc] sm:$0xf]
    %v59 = vld [vmem:[#allocation2 + $0x10] sm:$0xf]
    %v60 = vld [vmem:[#allocation2 + $0x14] sm:$0xf]
    %v61 = vld [vmem:[#allocation2 + $0x18] sm:$0xf]
    %v62 = vld [vmem:[#allocation2 + $0x1c] sm:$0xf]
    %v63 = vld [vmem:[#allocation2 + $0x20] sm:$0xf]
    %v64 = vld [vmem:[#allocation2 + $0x24] sm:$0xf]
    %v65 = vld [vmem:[#allocation2 + $0x28] sm:$0xf]
    %v66 = vld [vmem:[#allocation2 + $0x2c] sm:$0xf]
    %v67 = vld [vmem:[#allocation2 + $0x30] sm:$0xf]
    %v68 = vld [vmem:[#allocation2 + $0x34] sm:$0xf]
    %v69 = vld [vmem:[#allocation2 + $0x38] sm:$0xf]
    %v70 = vld [vmem:[#allocation2 + $0x3c] sm:$0xf]
    %v71 = vld [vmem:[%s2] sm:$0x1]
    %v73 = vperm.slane %v71, 0
    %v91 = vunpack.c.l.b16 %v55
    %v92 = vunpack.c.l.b16 %v56
    %v93 = vunpack.c.l.b16 %v57
    %v94 = vunpack.c.l.b16 %v58
    %v95 = vunpack.c.l.b16 %v59
    %v96 = vunpack.c.l.b16 %v60
    %v97 = vunpack.c.l.b16 %v61
    %v98 = vunpack.c.l.b16 %v62
    %v99 = vunpack.c.l.b16 %v63
    %v100 = vunpack.c.l.b16 %v64
    %v101 = vunpack.c.l.b16 %v65
    %v102 = vunpack.c.l.b16 %v66
    %v103 = vunpack.c.l.b16 %v67
    %v104 = vunpack.c.l.b16 %v68
    %v105 = vunpack.c.l.b16 %v69
    %v106 = vunpack.c.l.b16 %v70
    %v107 = vpack.c.b16 %v92, %v91
    %v108 = vpack.c.b16 %v94, %v93
    %v109 = vpack.c.b16 %v96, %v95
    %v110 = vpack.c.b16 %v98, %v97
    %v111 = vpack.c.b16 %v100, %v99
    %v112 = vpack.c.b16 %v102, %v101
    %v113 = vpack.c.b16 %v104, %v103
    %v114 = vpack.c.b16 %v106, %v105
    %123 = vmatpush.bf16.msra.mxu0 %v114
    %124 = vmatpush.bf16.msra.mxu0 %v113
    %125 = vmatpush.bf16.msra.mxu0 %v112
    %126 = vmatpush.bf16.msra.mxu0 %v111
    %127 = vmatpush.bf16.msra.mxu0 %v110
    %128 = vmatpush.bf16.msra.mxu0 %v109
    %129 = vmatpush.bf16.msra.mxu0 %v108
    %130 = vmatpush.bf16.msra.mxu0 %v107
    %131 = vmatmul.bf16.gmra.mxu0 %v54
    %v132 = vpop.f32.mrf.mxu0
    %v133 = vadd.f32 %v73, %v132
    %v134 = vpop.f32.mrf.mxu0
    %v135 = vadd.f32 %v73, %v134
    %136 = vdwg.mxu0
    %v137 = vmax.f32 %v133, 0.0
    %v138 = vmax.f32 %v135, 0.0
    %v139 = vpack.c.bf16 %v138, %v137
    %v140 = vld [vmem:[#allocation4] sm:$0xf]
    %v141 = vld [vmem:[#allocation4 + $0x4] sm:$0xf]
    %v142 = vld [vmem:[#allocation4 + $0x8] sm:$0xf]
    %v143 = vld [vmem:[#allocation4 + $0xc] sm:$0xf]
    %v144 = vld [vmem:[#allocation4 + $0x10] sm:$0xf]
    %v145 = vld [vmem:[#allocation4 + $0x14] sm:$0xf]
    %v146 = vld [vmem:[#allocation4 + $0x18] sm:$0xf]
    %v147 = vld [vmem:[#allocation4 + $0x1c] sm:$0xf]
    %v148 = vld [vmem:[#allocation4 + $0x20] sm:$0xf]
    %v149 = vld [vmem:[#allocation4 + $0x24] sm:$0xf]
    %v150 = vld [vmem:[#allocation4 + $0x28] sm:$0xf]
    %v151 = vld [vmem:[#allocation4 + $0x2c] sm:$0xf]
    %v152 = vld [vmem:[#allocation4 + $0x30] sm:$0xf]
    %v153 = vld [vmem:[#allocation4 + $0x34] sm:$0xf]
    %v154 = vld [vmem:[#allocation4 + $0x38] sm:$0xf]
    %v155 = vld [vmem:[#allocation4 + $0x3c] sm:$0xf]
    %v156 = vld [vmem:[%s4] sm:$0x1]
    %v158 = vperm.slane %v156, 0
    %v176 = vunpack.c.l.b16 %v140
    %v177 = vunpack.c.l.b16 %v141
    %v178 = vunpack.c.l.b16 %v142
    %v179 = vunpack.c.l.b16 %v143
    %v180 = vunpack.c.l.b16 %v144
    %v181 = vunpack.c.l.b16 %v145
    %v182 = vunpack.c.l.b16 %v146
    %v183 = vunpack.c.l.b16 %v147
    %v184 = vunpack.c.l.b16 %v148
    %v185 = vunpack.c.l.b16 %v149
    %v186 = vunpack.c.l.b16 %v150
    %v187 = vunpack.c.l.b16 %v151
    %v188 = vunpack.c.l.b16 %v152
    %v189 = vunpack.c.l.b16 %v153
    %v190 = vunpack.c.l.b16 %v154
    %v191 = vunpack.c.l.b16 %v155
    %v192 = vpack.c.b16 %v177, %v176
    %v193 = vpack.c.b16 %v179, %v178
    %v194 = vpack.c.b16 %v181, %v180
    %v195 = vpack.c.b16 %v183, %v182
    %v196 = vpack.c.b16 %v185, %v184
    %v197 = vpack.c.b16 %v187, %v186
    %v198 = vpack.c.b16 %v189, %v188
    %v199 = vpack.c.b16 %v191, %v190
    %208 = vmatpush.bf16.msra.mxu0 %v199
    %209 = vmatpush.bf16.msra.mxu0 %v198
    %210 = vmatpush.bf16.msra.mxu0 %v197
    %211 = vmatpush.bf16.msra.mxu0 %v196
    %212 = vmatpush.bf16.msra.mxu0 %v195
    %213 = vmatpush.bf16.msra.mxu0 %v194
    %214 = vmatpush.bf16.msra.mxu0 %v193
    %215 = vmatpush.bf16.msra.mxu0 %v192
    %216 = vmatmul.bf16.gmra.mxu0 %v139
    %v217 = vpop.f32.mrf.mxu0
    %v218 = vadd.f32 %v158, %v217
    %v219 = vpop.f32.mrf.mxu0
    %v220 = vadd.f32 %v158, %v219
    %221 = vdwg.mxu0
    %v222 = vxor.u32 %v218, 2147483648
    %v223 = vxor.u32 %v220, 2147483648
    %v224 = vmul.f32 %v222, 1.442695
    %v225 = vpow.pop %v224
    %v226 = vmul.f32 %v223, 1.442695
    %v227 = vpow.pop %v226
    %v228 = vadd.f32 %v225, 1.0
    %v229 = vadd.f32 %v227, 1.0
    %v230 = vrcp.pop %v228
    %v231 = vmul.f32 %v228, %v230
    %v232 = vsub.f32 1.0, %v231
    %v233 = vmul.f32 %v230, %v232
    %v234 = vadd.f32 %v230, %v233
    %vm235 = vweird.f32 %v228
    %vm236 = vweird.f32 %v230
    %vm237 = vmor %vm235, %vm236
    %v238 = vsel %vm237, %v230, %v234
    %v239 = vand.u32 2147483647, %v228
    %vm240 = vcmp.eq.f32.partialorder %v239, 8.507059e+37
    %v241 = vand.u32 %v228, 2147483648
    %v242 = vor.u32 1.1754944e-38, %v241
    %v243 = vsel %vm240, %v242, %v238
    %v244 = vmul.f32 1.0, %v243
    %v245 = vrcp.pop %v229
    %v246 = vmul.f32 %v229, %v245
    %v247 = vsub.f32 1.0, %v246
    %v248 = vmul.f32 %v245, %v247
    %v249 = vadd.f32 %v245, %v248
    %vm250 = vweird.f32 %v229
    %vm251 = vweird.f32 %v245
    %vm252 = vmor %vm250, %vm251
    %v253 = vsel %vm252, %v245, %v249
    %v254 = vand.u32 2147483647, %v229
    %vm255 = vcmp.eq.f32.partialorder %v254, 8.507059e+37
    %v256 = vand.u32 %v229, 2147483648
    %v257 = vor.u32 1.1754944e-38, %v256
    %v258 = vsel %vm255, %v257, %v253
    %v259 = vmul.f32 1.0, %v258
    %vm260 = vcmask 31744
    %261 = vst.msk [vmem:[%s5] sm:$0xff] %vm260, %v244
    %262 = vst.msk [vmem:[%s5 + $0x8] sm:$0xff] %vm260, %v259
    // Predicated region
    $region30: #{multilabel_class_nn.1} parent=1 // pred_check
      _
    $region31: #{multilabel_class_nn.1} parent=1 // pred_check_branch
      %264 = sbr.rel (0) target = $region33
    $region32: #{multilabel_class_nn.1} parent=1 // pred_region
      _
    $region33: #{multilabel_class_nn.1} parent=1 // pred_fallthru
      _
    // Predicated region
    $region34: #{multilabel_class_nn.1} parent=1 // pred_check
      _
    $region35: #{multilabel_class_nn.1} parent=1 // pred_check_branch
      %266 = sbr.rel (0) target = $region37
    $region36: #{multilabel_class_nn.1} parent=1 // pred_region
      _
    $region37: #{multilabel_class_nn.1} parent=1 // pred_fallthru
      _
    %267 = vsyncpa [#allocation3], 1
    %268 = vsyncpa [#allocation5], 1

// kernel: multilabel_class_nn.1
$region0: #{multilabel_class_nn.1}
  #allocation0 [shape = 'u32[]', space=smem, size = 0x4, offset = 0x4, fixed_abs, tag = 'smem constant byte address 0x4 - core index']
  #allocation1 [shape = 'u32[72,128]{1,0:T(1,128)}', space=vmem, size = 0x9000, scoped, tag = 'internal scratch']
  %s0 = inlined_call_operand.vmem [shape: f32[16,128], index: 0, kind: input, shape index: {}]
  %s1 = inlined_call_operand.hbm [shape: bf16[128,128], index: 1, kind: input, shape index: {}]
  %s2 = inlined_call_operand.vmem [shape: f32[1,128], index: 2, kind: input, shape index: {}]
  %s3 = inlined_call_operand.hbm [shape: bf16[128,128], index: 3, kind: input, shape index: {}]
  %s4 = inlined_call_operand.vmem [shape: f32[1,128], index: 4, kind: input, shape index: {}]
  %s5 = inlined_call_operand.vmem [shape: f32[16,4], index: 5, kind: output, shape index: {}]
  %s6 = sld [smem:[#allocation0]]
  $region38: #{multilabel_class_nn.1} parent=0
    _
  %s8 = ssub.s32 1, %s6
  %s9 = scalar_select 0, %s8, %s6
  $region1: #{multilabel_class_nn.1} parent=0
    #allocation2 [shape = 'u8[32768]{0}', space=vmem, size = 0x8000, scoped, tag = 'input window, operand 1, single buffered']
    #allocation3 [shape = 's32[1]{0}', space=sflag, size = 0x4, scoped, tag = 'scoped memory for multilabel_class_nn.1']
    #allocation4 [shape = 'u8[32768]{0}', space=vmem, size = 0x8000, scoped, tag = 'input window, operand 3, single buffered']
    #allocation5 [shape = 's32[1]{0}', space=sflag, size = 0x4, scoped, tag = 'scoped memory for multilabel_class_nn.1']
    %10 = vsyncpa [#allocation3], 0
    %11 = vsyncpa [#allocation5], 0
    // Predicated region
    $region2: #{multilabel_class_nn.1} parent=1 // pred_check
      _
    $region3: #{multilabel_class_nn.1} parent=1 // pred_check_branch
      %13 = sbr.rel (0) target = $region5
    $region4: #{multilabel_class_nn.1} parent=1 // pred_region
      _
    $region5: #{multilabel_class_nn.1} parent=1 // pred_fallthru
      _
    // Predicated region
    $region6: #{multilabel_class_nn.1} parent=1 // pred_check
      _
    $region7: #{multilabel_class_nn.1} parent=1 // pred_check_branch
      %15 = sbr.rel (0) target = $region9
    $region8: #{multilabel_class_nn.1} parent=1 // pred_region
      %17 = vsyncadd [#allocation3], 0
      %s18 = sshll.u32 %s1, 4
      %s19 = int_to_ptr.hbm [resolvable:$true] %s18
      %s20 = sshll.u32 [#allocation2], 4
      %s21 = int_to_ptr.vmem [resolvable:$true] %s20
      %26 = dma.hbm_to_vmem [thread:$0]  %s19, 1024, %s21, [#allocation3], 64, 64, 4
    $region9: #{multilabel_class_nn.1} parent=1 // pred_fallthru
      _
    // Predicated region
    $region10: #{multilabel_class_nn.1} parent=1 // pred_check
      _
    $region11: #{multilabel_class_nn.1} parent=1 // pred_check_branch
      %28 = sbr.rel (0) target = $region13
    $region12: #{multilabel_class_nn.1} parent=1 // pred_region
      _
    $region13: #{multilabel_class_nn.1} parent=1 // pred_fallthru
      _
    // Predicated region
    $region14: #{multilabel_class_nn.1} parent=1 // pred_check
      _
    $region15: #{multilabel_class_nn.1} parent=1 // pred_check_branch
      %30 = sbr.rel (0) target = $region17
    $region16: #{multilabel_class_nn.1} parent=1 // pred_region
      %32 = vsyncadd [#allocation5], 0
      %s33 = sshll.u32 %s3, 4
      %s34 = int_to_ptr.hbm [resolvable:$true] %s33
      %s35 = sshll.u32 [#allocation4], 4
      %s36 = int_to_ptr.vmem [resolvable:$true] %s35
      %41 = dma.hbm_to_vmem [thread:$0]  %s34, 1024, %s36, [#allocation5], 64, 64, 4
    $region17: #{multilabel_class_nn.1} parent=1 // pred_fallthru
      _
    // Predicated region
    $region18: #{multilabel_class_nn.1} parent=1 // pred_check
      _
    $region19: #{multilabel_class_nn.1} parent=1 // pred_check_branch
      %43 = sbr.rel (0) target = $region21
    $region20: #{multilabel_class_nn.1} parent=1 // pred_region
      _
    $region21: #{multilabel_class_nn.1} parent=1 // pred_fallthru
      _
    // Predicated region
    $region22: #{multilabel_class_nn.1} parent=1 // pred_check
      _
    $region23: #{multilabel_class_nn.1} parent=1 // pred_check_branch
      %45 = sbr.rel (0) target = $region25
    $region24: #{multilabel_class_nn.1} parent=1 // pred_region
      %47 = dma.done [#allocation3], 1024
    $region25: #{multilabel_class_nn.1} parent=1 // pred_fallthru
      _
    // Predicated region
    $region26: #{multilabel_class_nn.1} parent=1 // pred_check
      _
    $region27: #{multilabel_class_nn.1} parent=1 // pred_check_branch
      %49 = sbr.rel (0) target = $region29
    $region28: #{multilabel_class_nn.1} parent=1 // pred_region
      %51 = dma.done [#allocation5], 1024
    $region29: #{multilabel_class_nn.1} parent=1 // pred_fallthru
      _
    %v52 = vld [vmem:[%s0] sm:$0xff]
    %v53 = vld [vmem:[%s0 + $0x8] sm:$0xff]
    %v54 = vpack.c.bf16 %v53, %v52
    %v55 = vld [vmem:[#allocation2] sm:$0xf]
    %v56 = vld [vmem:[#allocation2 + $0x4] sm:$0xf]
    %v57 = vld [vmem:[#allocation2 + $0x8] sm:$0xf]
    %v58 = vld [vmem:[#allocation2 + $0xc] sm:$0xf]
    %v59 = vld [vmem:[#allocation2 + $0x10] sm:$0xf]
    %v60 = vld [vmem:[#allocation2 + $0x14] sm:$0xf]
    %v61 = vld [vmem:[#allocation2 + $0x18] sm:$0xf]
    %v62 = vld [vmem:[#allocation2 + $0x1c] sm:$0xf]
    %v63 = vld [vmem:[#allocation2 + $0x20] sm:$0xf]
    %v64 = vld [vmem:[#allocation2 + $0x24] sm:$0xf]
    %v65 = vld [vmem:[#allocation2 + $0x28] sm:$0xf]
    %v66 = vld [vmem:[#allocation2 + $0x2c] sm:$0xf]
    %v67 = vld [vmem:[#allocation2 + $0x30] sm:$0xf]
    %v68 = vld [vmem:[#allocation2 + $0x34] sm:$0xf]
    %v69 = vld [vmem:[#allocation2 + $0x38] sm:$0xf]
    %v70 = vld [vmem:[#allocation2 + $0x3c] sm:$0xf]
    %v71 = vld [vmem:[%s2] sm:$0x1]
    %v73 = vperm.slane %v71, 0
    %v91 = vunpack.c.l.b16 %v55
    %v92 = vunpack.c.l.b16 %v56
    %v93 = vunpack.c.l.b16 %v57
    %v94 = vunpack.c.l.b16 %v58
    %v95 = vunpack.c.l.b16 %v59
    %v96 = vunpack.c.l.b16 %v60
    %v97 = vunpack.c.l.b16 %v61
    %v98 = vunpack.c.l.b16 %v62
    %v99 = vunpack.c.l.b16 %v63
    %v100 = vunpack.c.l.b16 %v64
    %v101 = vunpack.c.l.b16 %v65
    %v102 = vunpack.c.l.b16 %v66
    %v103 = vunpack.c.l.b16 %v67
    %v104 = vunpack.c.l.b16 %v68
    %v105 = vunpack.c.l.b16 %v69
    %v106 = vunpack.c.l.b16 %v70
    %v107 = vpack.c.b16 %v92, %v91
    %v108 = vpack.c.b16 %v94, %v93
    %v109 = vpack.c.b16 %v96, %v95
    %v110 = vpack.c.b16 %v98, %v97
    %v111 = vpack.c.b16 %v100, %v99
    %v112 = vpack.c.b16 %v102, %v101
    %v113 = vpack.c.b16 %v104, %v103
    %v114 = vpack.c.b16 %v106, %v105
    %123 = vmatpush.bf16.msra.mxu0 %v114
    %124 = vmatpush.bf16.msra.mxu0 %v113
    %125 = vmatpush.bf16.msra.mxu0 %v112
    %126 = vmatpush.bf16.msra.mxu0 %v111
    %127 = vmatpush.bf16.msra.mxu0 %v110
    %128 = vmatpush.bf16.msra.mxu0 %v109
    %129 = vmatpush.bf16.msra.mxu0 %v108
    %130 = vmatpush.bf16.msra.mxu0 %v107
    %131 = vmatmul.bf16.gmra.mxu0 %v54
    %v132 = vpop.f32.mrf.mxu0
    %v133 = vadd.f32 %v73, %v132
    %v134 = vpop.f32.mrf.mxu0
    %v135 = vadd.f32 %v73, %v134
    %136 = vdwg.mxu0
    %v137 = vmax.f32 %v133, 0.0
    %v138 = vmax.f32 %v135, 0.0
    %v139 = vpack.c.bf16 %v138, %v137
    %v140 = vld [vmem:[#allocation4] sm:$0xf]
    %v141 = vld [vmem:[#allocation4 + $0x4] sm:$0xf]
    %v142 = vld [vmem:[#allocation4 + $0x8] sm:$0xf]
    %v143 = vld [vmem:[#allocation4 + $0xc] sm:$0xf]
    %v144 = vld [vmem:[#allocation4 + $0x10] sm:$0xf]
    %v145 = vld [vmem:[#allocation4 + $0x14] sm:$0xf]
    %v146 = vld [vmem:[#allocation4 + $0x18] sm:$0xf]
    %v147 = vld [vmem:[#allocation4 + $0x1c] sm:$0xf]
    %v148 = vld [vmem:[#allocation4 + $0x20] sm:$0xf]
    %v149 = vld [vmem:[#allocation4 + $0x24] sm:$0xf]
    %v150 = vld [vmem:[#allocation4 + $0x28] sm:$0xf]
    %v151 = vld [vmem:[#allocation4 + $0x2c] sm:$0xf]
    %v152 = vld [vmem:[#allocation4 + $0x30] sm:$0xf]
    %v153 = vld [vmem:[#allocation4 + $0x34] sm:$0xf]
    %v154 = vld [vmem:[#allocation4 + $0x38] sm:$0xf]
    %v155 = vld [vmem:[#allocation4 + $0x3c] sm:$0xf]
    %v156 = vld [vmem:[%s4] sm:$0x1]
    %v158 = vperm.slane %v156, 0
    %v176 = vunpack.c.l.b16 %v140
    %v177 = vunpack.c.l.b16 %v141
    %v178 = vunpack.c.l.b16 %v142
    %v179 = vunpack.c.l.b16 %v143
    %v180 = vunpack.c.l.b16 %v144
    %v181 = vunpack.c.l.b16 %v145
    %v182 = vunpack.c.l.b16 %v146
    %v183 = vunpack.c.l.b16 %v147
    %v184 = vunpack.c.l.b16 %v148
    %v185 = vunpack.c.l.b16 %v149
    %v186 = vunpack.c.l.b16 %v150
    %v187 = vunpack.c.l.b16 %v151
    %v188 = vunpack.c.l.b16 %v152
    %v189 = vunpack.c.l.b16 %v153
    %v190 = vunpack.c.l.b16 %v154
    %v191 = vunpack.c.l.b16 %v155
    %v192 = vpack.c.b16 %v177, %v176
    %v193 = vpack.c.b16 %v179, %v178
    %v194 = vpack.c.b16 %v181, %v180
    %v195 = vpack.c.b16 %v183, %v182
    %v196 = vpack.c.b16 %v185, %v184
    %v197 = vpack.c.b16 %v187, %v186
    %v198 = vpack.c.b16 %v189, %v188
    %v199 = vpack.c.b16 %v191, %v190
    %208 = vmatpush.bf16.msra.mxu0 %v199
    %209 = vmatpush.bf16.msra.mxu0 %v198
    %210 = vmatpush.bf16.msra.mxu0 %v197
    %211 = vmatpush.bf16.msra.mxu0 %v196
    %212 = vmatpush.bf16.msra.mxu0 %v195
    %213 = vmatpush.bf16.msra.mxu0 %v194
    %214 = vmatpush.bf16.msra.mxu0 %v193
    %215 = vmatpush.bf16.msra.mxu0 %v192
    %216 = vmatmul.bf16.gmra.mxu0 %v139
    %v217 = vpop.f32.mrf.mxu0
    %v218 = vadd.f32 %v158, %v217
    %v219 = vpop.f32.mrf.mxu0
    %v220 = vadd.f32 %v158, %v219
    %221 = vdwg.mxu0
    %v222 = vxor.u32 %v218, 2147483648
    %v223 = vxor.u32 %v220, 2147483648
    %v224 = vmul.f32 %v222, 1.442695
    %v225 = vpow.pop %v224
    %v226 = vmul.f32 %v223, 1.442695
    %v227 = vpow.pop %v226
    %v228 = vadd.f32 %v225, 1.0
    %v229 = vadd.f32 %v227, 1.0
    %v230 = vrcp.pop %v228
    %v231 = vmul.f32 %v228, %v230
    %v232 = vsub.f32 1.0, %v231
    %v233 = vmul.f32 %v230, %v232
    %v234 = vadd.f32 %v230, %v233
    %vm235 = vweird.f32 %v228
    %vm236 = vweird.f32 %v230
    %vm237 = vmor %vm235, %vm236
    %v238 = vsel %vm237, %v230, %v234
    %v239 = vand.u32 2147483647, %v228
    %vm240 = vcmp.eq.f32.partialorder %v239, 8.507059e+37
    %v241 = vand.u32 %v228, 2147483648
    %v242 = vor.u32 1.1754944e-38, %v241
    %v243 = vsel %vm240, %v242, %v238
    %v244 = vmul.f32 1.0, %v243
    %v245 = vrcp.pop %v229
    %v246 = vmul.f32 %v229, %v245
    %v247 = vsub.f32 1.0, %v246
    %v248 = vmul.f32 %v245, %v247
    %v249 = vadd.f32 %v245, %v248
    %vm250 = vweird.f32 %v229
    %vm251 = vweird.f32 %v245
    %vm252 = vmor %vm250, %vm251
    %v253 = vsel %vm252, %v245, %v249
    %v254 = vand.u32 2147483647, %v229
    %vm255 = vcmp.eq.f32.partialorder %v254, 8.507059e+37
    %v256 = vand.u32 %v229, 2147483648
    %v257 = vor.u32 1.1754944e-38, %v256
    %v258 = vsel %vm255, %v257, %v253
    %v259 = vmul.f32 1.0, %v258
    %vm260 = vcmask 31744
    %261 = vst.msk [vmem:[%s5] sm:$0xff] %vm260, %v244
    %262 = vst.msk [vmem:[%s5 + $0x8] sm:$0xff] %vm260, %v259
    // Predicated region
    $region30: #{multilabel_class_nn.1} parent=1 // pred_check
      _
    $region31: #{multilabel_class_nn.1} parent=1 // pred_check_branch
      %264 = sbr.rel (0) target = $region33
    $region32: #{multilabel_class_nn.1} parent=1 // pred_region
      _
    $region33: #{multilabel_class_nn.1} parent=1 // pred_fallthru
      _
    // Predicated region
    $region34: #{multilabel_class_nn.1} parent=1 // pred_check
      _
    $region35: #{multilabel_class_nn.1} parent=1 // pred_check_branch
      %266 = sbr.rel (0) target = $region37
    $region36: #{multilabel_class_nn.1} parent=1 // pred_region
      _
    $region37: #{multilabel_class_nn.1} parent=1 // pred_fallthru
      _
    %267 = vsyncpa [#allocation3], 1
    %268 = vsyncpa [#allocation5], 1

</llo_original>
